<compile_context>
chip_gen: v7x
topology: tpu7x:2x2x1
jax: 0.10.0
libtpu: 0.0.40
codegen_flags: <defaults>
</compile_context>

<pallas_src>
import math
import jax
import jax.numpy as jnp
from jax.experimental import pallas as pl
from jax.experimental.pallas import tpu as pltpu

LANE = 128


def _round_up(x, m):
    return ((x + m - 1) // m) * m


# ---------------------------------------------------------------------------
# Kernel
# ---------------------------------------------------------------------------
def actor_kernel(x_ref,
                 w1_ref, b1_ref,
                 w2_ref, b2_ref,
                 w3_ref, b3_ref,
                 w4_ref, b4_ref,
                 o_ref):
    cdt = w1_ref.dtype  # MXU input dtype (bf16 by default); accumulation is f32
    # Layer 1: Linear(state_dim, 256) + ReLU  (unpadded K is fine for the MXU)
    h = jnp.dot(x_ref[...].astype(cdt), w1_ref[...],
                preferred_element_type=jnp.float32)
    h = jnp.maximum(h + b1_ref[...], 0.0)
    # Layer 2: Linear(256, 128) + ReLU
    h = jnp.dot(h.astype(cdt), w2_ref[...], preferred_element_type=jnp.float32)
    h = jnp.maximum(h + b2_ref[...], 0.0)
    # Layer 3: Linear(128, 128-padded-from-64) + ReLU (pad cols are exact zeros)
    h = jnp.dot(h.astype(cdt), w3_ref[...], preferred_element_type=jnp.float32)
    h = jnp.maximum(h + b3_ref[...], 0.0)
    # Layer 4: Linear(128, action_dim) + Tanh  (output stored at true width)
    h = jnp.dot(h.astype(cdt), w4_ref[...], preferred_element_type=jnp.float32)
    o_ref[...] = jnp.tanh(h + b4_ref[...])


# ---------------------------------------------------------------------------
# One-time weight prep (OUTSIDE the hot path)
# ---------------------------------------------------------------------------
def prepare_actor_params(params, *, compute_dtype=jnp.bfloat16):
    """Pad + cast weights/biases once.  Layer-3 output is padded 64 -> 128 so
    layers 3/4 stay lane-aligned; the zero pad lanes are mathematically inert
    (ReLU(0)=0 feeds zero rows of w4)."""
    h3_pad = LANE

    def padcols(a, cols):
        return jnp.pad(a, ((0, 0), (0, cols - a.shape[1])))

    def padrows(a, rows):
        return jnp.pad(a, ((0, rows - a.shape[0]), (0, 0)))

    return dict(
        w1=params["w1"].astype(compute_dtype),                   # (state_dim, 256)
        b1=params["b1"].astype(jnp.float32),                     # (1, 256)
        w2=params["w2"].astype(compute_dtype),                   # (256, 128)
        b2=params["b2"].astype(jnp.float32),                     # (1, 128)
        w3=padcols(params["w3"], h3_pad).astype(compute_dtype),  # (128, 128)
        b3=padcols(params["b3"].astype(jnp.float32), h3_pad),    # (1, 128)
        w4=padrows(params["w4"], h3_pad).astype(compute_dtype),  # (128, action_dim)
        b4=params["b4"].astype(jnp.float32),                     # (1, action_dim)
    )


def _batch_tiling(B, tile_b):
    """Pick the batch tile.  Small batches: one 16-aligned tile (no grid-step
    overhead).  Larger batches: at least 2 'parallel' grid steps (v7x has two
    TensorCores), capped at tile_b to amortize per-step overhead."""
    if B <= 256:
        tb = max(16, _round_up(B, 16))
    else:
        tb = min(tile_b, max(16, _round_up(-(-B // 2), 16)))
    B_pad = _round_up(B, tb)
    return tb, B_pad


# ---------------------------------------------------------------------------
# Hot-path forward
# ---------------------------------------------------------------------------
def actor_forward(state, prep, *, tile_b=1024):
    """state: (B, state_dim) float32.  prep: output of prepare_actor_params."""
    B, state_dim = state.shape
    action_dim = prep["w4"].shape[1]

    tb, B_pad = _batch_tiling(B, tile_b)
    x = state if B_pad == B else jnp.pad(state, ((0, B_pad - B), (0, 0)))

    # Weights/biases: whole-array VMEM-resident (not re-pipelined per grid step).
    resident = pl.BlockSpec(memory_space=pltpu.MemorySpace.VMEM)

    out = pl.pallas_call(
        actor_kernel,
        out_shape=jax.ShapeDtypeStruct((B_pad, action_dim), jnp.float32),
        grid_spec=pltpu.PrefetchScalarGridSpec(
            num_scalar_prefetch=0,
            grid=(B_pad // tb,),
            in_specs=[
                pl.BlockSpec((tb, state_dim), lambda i: (i, 0)),  # state tile
                resident, resident,   # w1, b1
                resident, resident,   # w2, b2
                resident, resident,   # w3, b3
                resident, resident,   # w4, b4
            ],
            out_specs=pl.BlockSpec((tb, action_dim), lambda i: (i, 0)),
        ),
        compiler_params=pltpu.CompilerParams(
            dimension_semantics=("parallel",)),
    )(x, prep["w1"], prep["b1"], prep["w2"], prep["b2"],
      prep["w3"], prep["b3"], prep["w4"], prep["b4"])

    return out if B_pad == B else out[:B]


# ---------------------------------------------------------------------------
# Init matching the PyTorch module
# ---------------------------------------------------------------------------
def init_actor_params(key, state_dim, action_dim):
    """Layers 0/2/4: xavier_uniform weights + default PyTorch bias init;
    final layer: weight ~ U(-0.003, 0.003).  Weights pre-transposed to (in, out)."""
    dims = [(state_dim, 256), (256, 128), (128, 64), (64, action_dim)]
    keys = jax.random.split(key, 8)
    params = {}
    for idx, (fan_in, fan_out) in enumerate(dims):
        wkey, bkey = keys[2 * idx], keys[2 * idx + 1]
        if idx < 3:
            bound = math.sqrt(6.0 / (fan_in + fan_out))   # xavier uniform
        else:
            bound = 0.003                                 # final layer
        w = jax.random.uniform(wkey, (fan_in, fan_out), jnp.float32,
                               minval=-bound, maxval=bound)
        bb = 1.0 / math.sqrt(fan_in)  # PyTorch Linear default bias init
        b = jax.random.uniform(bkey, (1, fan_out), jnp.float32,
                               minval=-bb, maxval=bb)
        params[f"w{idx + 1}"] = w
        params[f"b{idx + 1}"] = b
    return params


if __name__ == "__main__":
    key = jax.random.PRNGKey(0)
    k_state, k_params, k_big = jax.random.split(key, 3)

    batch, state_dim, action_dim = 32, 24, 6
    state = jax.random.normal(k_state, (batch, state_dim), jnp.float32)
    params = init_actor_params(k_params, state_dim, action_dim)

    def ref_fwd(s):
        h = jnp.maximum(s @ params["w1"] + params["b1"], 0.0)
        h = jnp.maximum(h @ params["w2"] + params["b2"], 0.0)
        h = jnp.maximum(h @ params["w3"] + params["b3"], 0.0)
        return jnp.tanh(h @ params["w4"] + params["b4"])

    ref = ref_fwd(state)

    # 1) Exact-math path (f32 MXU inputs): tight tolerance, single-tile grid.
    prep_f32 = prepare_actor_params(params, compute_dtype=jnp.float32)
    out_f32 = jax.block_until_ready(actor_forward(state, prep_f32))
    assert out_f32.shape == (batch, action_dim)
    assert jnp.allclose(out_f32, ref, atol=1e-5, rtol=1e-5)

    # 2) Default fast path (bf16 MXU inputs, f32 accumulation / epilogue).
    prep_bf16 = prepare_actor_params(params)
    out_bf16 = jax.block_until_ready(actor_forward(state, prep_bf16))
    assert out_bf16.shape == (batch, action_dim)
    assert jnp.allclose(out_bf16, ref, atol=3e-2, rtol=3e-2)

    # 3) Ragged larger batch: exercises the >=2-step "parallel" grid (both v7x
    #    TensorCores) plus the row pad / slice path.
    big_batch = 300
    big_state = jax.random.normal(k_big, (big_batch, state_dim), jnp.float32)
    out_big = jax.block_until_ready(actor_forward(big_state, prep_bf16))
    assert out_big.shape == (big_batch, action_dim)
    assert jnp.allclose(out_big, ref_fwd(big_state), atol=3e-2, rtol=3e-2)

    print("KERNEL_OK")
</pallas_src>

<mosaic_0001>
module attributes {stable_mosaic.version = 11 : i64} {
  func.func @actor_kernel(%arg0: i32, %arg1: memref<32x24xf32, #tpu.memory_space<vmem>>, %arg2: memref<24x256xf32, #tpu.memory_space<vmem>>, %arg3: memref<1x256xf32, #tpu.memory_space<vmem>>, %arg4: memref<256x128xf32, #tpu.memory_space<vmem>>, %arg5: memref<1x128xf32, #tpu.memory_space<vmem>>, %arg6: memref<128x128xf32, #tpu.memory_space<vmem>>, %arg7: memref<1x128xf32, #tpu.memory_space<vmem>>, %arg8: memref<128x6xf32, #tpu.memory_space<vmem>>, %arg9: memref<1x6xf32, #tpu.memory_space<vmem>>, %arg10: memref<32x6xf32, #tpu.memory_space<vmem>>) attributes {dimension_semantics = [#tpu.dimension_semantics<parallel>], iteration_bounds = array<i64: 1>, scalar_prefetch = 0 : i64, scratch_operands = 0 : i64, tpu.core_type = #tpu.core_type<tc>, window_params = [{transform_indices = @transform_0, window_bounds = array<i64: 32, 24>}, {pipeline_mode = #tpu.pipeline_mode<synchronous>, transform_indices = @transform_1, window_bounds = array<i64: 24, 256>}, {pipeline_mode = #tpu.pipeline_mode<synchronous>, transform_indices = @transform_2, window_bounds = array<i64: 1, 256>}, {pipeline_mode = #tpu.pipeline_mode<synchronous>, transform_indices = @transform_3, window_bounds = array<i64: 256, 128>}, {pipeline_mode = #tpu.pipeline_mode<synchronous>, transform_indices = @transform_4, window_bounds = array<i64: 1, 128>}, {pipeline_mode = #tpu.pipeline_mode<synchronous>, transform_indices = @transform_5, window_bounds = array<i64: 128, 128>}, {pipeline_mode = #tpu.pipeline_mode<synchronous>, transform_indices = @transform_6, window_bounds = array<i64: 1, 128>}, {pipeline_mode = #tpu.pipeline_mode<synchronous>, transform_indices = @transform_7, window_bounds = array<i64: 128, 6>}, {pipeline_mode = #tpu.pipeline_mode<synchronous>, transform_indices = @transform_8, window_bounds = array<i64: 1, 6>}, {transform_indices = @transform_9, window_bounds = array<i64: 32, 6>}]} {
    %c0 = arith.constant 0 : index
    %c0_0 = arith.constant 0 : index
    %0 = vector.load %arg1[%c0, %c0_0] : memref<32x24xf32, #tpu.memory_space<vmem>>, vector<32x24xf32>
    %c0_1 = arith.constant 0 : index
    %c0_2 = arith.constant 0 : index
    %1 = vector.load %arg2[%c0_1, %c0_2] : memref<24x256xf32, #tpu.memory_space<vmem>>, vector<24x256xf32>
    %cst = arith.constant dense<0.000000e+00> : vector<32x256xf32>
    %2 = tpu.matmul %0, %1, %cst {dimension_numbers = #tpu.dot_dimension_numbers<[1], [0], [0], [1], [0, 0, 1, 1], [], []>} : vector<32x24xf32>, vector<24x256xf32>, vector<32x256xf32> -> vector<32x256xf32>
    %c0_3 = arith.constant 0 : index
    %c0_4 = arith.constant 0 : index
    %3 = vector.load %arg3[%c0_3, %c0_4] : memref<1x256xf32, #tpu.memory_space<vmem>>, vector<1x256xf32>
    %4 = vector.broadcast %3 : vector<1x256xf32> to vector<32x256xf32>
    %5 = arith.addf %2, %4 : vector<32x256xf32>
    %cst_5 = arith.constant 0.000000e+00 : f32
    %6 = vector.broadcast %cst_5 : f32 to vector<32x256xf32>
    %7 = arith.maximumf %5, %6 : vector<32x256xf32>
    %c0_6 = arith.constant 0 : index
    %c0_7 = arith.constant 0 : index
    %8 = vector.load %arg4[%c0_6, %c0_7] : memref<256x128xf32, #tpu.memory_space<vmem>>, vector<256x128xf32>
    %cst_8 = arith.constant dense<0.000000e+00> : vector<32x128xf32>
    %9 = tpu.matmul %7, %8, %cst_8 {dimension_numbers = #tpu.dot_dimension_numbers<[1], [0], [0], [1], [0, 0, 1, 1], [], []>} : vector<32x256xf32>, vector<256x128xf32>, vector<32x128xf32> -> vector<32x128xf32>
    %c0_9 = arith.constant 0 : index
    %c0_10 = arith.constant 0 : index
    %10 = vector.load %arg5[%c0_9, %c0_10] : memref<1x128xf32, #tpu.memory_space<vmem>>, vector<1x128xf32>
    %11 = vector.broadcast %10 : vector<1x128xf32> to vector<32x128xf32>
    %12 = arith.addf %9, %11 : vector<32x128xf32>
    %cst_11 = arith.constant 0.000000e+00 : f32
    %13 = vector.broadcast %cst_11 : f32 to vector<32x128xf32>
    %14 = arith.maximumf %12, %13 : vector<32x128xf32>
    %c0_12 = arith.constant 0 : index
    %c0_13 = arith.constant 0 : index
    %15 = vector.load %arg6[%c0_12, %c0_13] : memref<128x128xf32, #tpu.memory_space<vmem>>, vector<128x128xf32>
    %cst_14 = arith.constant dense<0.000000e+00> : vector<32x128xf32>
    %16 = tpu.matmul %14, %15, %cst_14 {dimension_numbers = #tpu.dot_dimension_numbers<[1], [0], [0], [1], [0, 0, 1, 1], [], []>} : vector<32x128xf32>, vector<128x128xf32>, vector<32x128xf32> -> vector<32x128xf32>
    %c0_15 = arith.constant 0 : index
    %c0_16 = arith.constant 0 : index
    %17 = vector.load %arg7[%c0_15, %c0_16] : memref<1x128xf32, #tpu.memory_space<vmem>>, vector<1x128xf32>
    %18 = vector.broadcast %17 : vector<1x128xf32> to vector<32x128xf32>
    %19 = arith.addf %16, %18 : vector<32x128xf32>
    %cst_17 = arith.constant 0.000000e+00 : f32
    %20 = vector.broadcast %cst_17 : f32 to vector<32x128xf32>
    %21 = arith.maximumf %19, %20 : vector<32x128xf32>
    %c0_18 = arith.constant 0 : index
    %c0_19 = arith.constant 0 : index
    %22 = vector.load %arg8[%c0_18, %c0_19] : memref<128x6xf32, #tpu.memory_space<vmem>>, vector<128x6xf32>
    %cst_20 = arith.constant dense<0.000000e+00> : vector<32x6xf32>
    %23 = tpu.matmul %21, %22, %cst_20 {dimension_numbers = #tpu.dot_dimension_numbers<[1], [0], [0], [1], [0, 0, 1, 1], [], []>} : vector<32x128xf32>, vector<128x6xf32>, vector<32x6xf32> -> vector<32x6xf32>
    %c0_21 = arith.constant 0 : index
    %c0_22 = arith.constant 0 : index
    %24 = vector.load %arg9[%c0_21, %c0_22] : memref<1x6xf32, #tpu.memory_space<vmem>>, vector<1x6xf32>
    %25 = vector.broadcast %24 : vector<1x6xf32> to vector<32x6xf32>
    %26 = arith.addf %23, %25 : vector<32x6xf32>
    %27 = math.tanh %26 : vector<32x6xf32>
    %c0_23 = arith.constant 0 : index
    %c0_24 = arith.constant 0 : index
    %28 = vector.load %arg10[%c0_23, %c0_24] : memref<32x6xf32, #tpu.memory_space<vmem>>, vector<32x6xf32>
    tpu.vector_store %arg10[%c0_23, %c0_24], %27 {strides = array<i32>} : memref<32x6xf32, #tpu.memory_space<vmem>>, vector<32x6xf32>,
    return
  }
  func.func @transform_0(%arg0: i32) -> (i32, i32) {
    %c0_i32 = arith.constant 0 : i32
    %c0_i32_0 = arith.constant 0 : i32
    return %arg0, %c0_i32 : i32, i32
  }
  func.func @transform_1(%arg0: i32) -> (i32, i32) {
    %c0_i32 = arith.constant 0 : i32
    %c0_i32_0 = arith.constant 0 : i32
    %c0_i32_1 = arith.constant 0 : i32
    return %c0_i32, %c0_i32_0 : i32, i32
  }
  func.func @transform_2(%arg0: i32) -> (i32, i32) {
    %c0_i32 = arith.constant 0 : i32
    %c0_i32_0 = arith.constant 0 : i32
    %c0_i32_1 = arith.constant 0 : i32
    return %c0_i32, %c0_i32_0 : i32, i32
  }
  func.func @transform_3(%arg0: i32) -> (i32, i32) {
    %c0_i32 = arith.constant 0 : i32
    %c0_i32_0 = arith.constant 0 : i32
    %c0_i32_1 = arith.constant 0 : i32
    return %c0_i32, %c0_i32_0 : i32, i32
  }
  func.func @transform_4(%arg0: i32) -> (i32, i32) {
    %c0_i32 = arith.constant 0 : i32
    %c0_i32_0 = arith.constant 0 : i32
    %c0_i32_1 = arith.constant 0 : i32
    return %c0_i32, %c0_i32_0 : i32, i32
  }
  func.func @transform_5(%arg0: i32) -> (i32, i32) {
    %c0_i32 = arith.constant 0 : i32
    %c0_i32_0 = arith.constant 0 : i32
    %c0_i32_1 = arith.constant 0 : i32
    return %c0_i32, %c0_i32_0 : i32, i32
  }
  func.func @transform_6(%arg0: i32) -> (i32, i32) {
    %c0_i32 = arith.constant 0 : i32
    %c0_i32_0 = arith.constant 0 : i32
    %c0_i32_1 = arith.constant 0 : i32
    return %c0_i32, %c0_i32_0 : i32, i32
  }
  func.func @transform_7(%arg0: i32) -> (i32, i32) {
    %c0_i32 = arith.constant 0 : i32
    %c0_i32_0 = arith.constant 0 : i32
    %c0_i32_1 = arith.constant 0 : i32
    return %c0_i32, %c0_i32_0 : i32, i32
  }
  func.func @transform_8(%arg0: i32) -> (i32, i32) {
    %c0_i32 = arith.constant 0 : i32
    %c0_i32_0 = arith.constant 0 : i32
    %c0_i32_1 = arith.constant 0 : i32
    return %c0_i32, %c0_i32_0 : i32, i32
  }
  func.func @transform_9(%arg0: i32) -> (i32, i32) {
    %c0_i32 = arith.constant 0 : i32
    %c0_i32_0 = arith.constant 0 : i32
    return %arg0, %c0_i32 : i32, i32
  }
}

</mosaic_0001>

<llo_original>
// kernel: tpu_custom_call.1
$region0: #{tpu_custom_call.1}
  #allocation0 [shape = 'u32[]', space=smem, size = 0x4, offset = 0x4, fixed_abs, tag = 'smem constant byte address 0x4 - core index']
  #allocation1 [shape = 'u32[144,128]{1,0:T(1,128)}', space=vmem, size = 0x12000, scoped, tag = 'internal scratch']
  %s0 = inlined_call_operand.vmem [shape: f32[32,24], index: 0, kind: input, shape index: {}]
  %s1 = inlined_call_operand.vmem [shape: f32[24,256], index: 1, kind: input, shape index: {}]
  %s2 = inlined_call_operand.vmem [shape: f32[1,256], index: 2, kind: input, shape index: {}]
  %s3 = inlined_call_operand.hbm [shape: f32[256,128], index: 3, kind: input, shape index: {}]
  %s4 = inlined_call_operand.vmem [shape: f32[1,128], index: 4, kind: input, shape index: {}]
  %s5 = inlined_call_operand.vmem [shape: f32[128,128], index: 5, kind: input, shape index: {}]
  %s6 = inlined_call_operand.vmem [shape: f32[1,128], index: 6, kind: input, shape index: {}]
  %s7 = inlined_call_operand.vmem [shape: f32[128,6], index: 7, kind: input, shape index: {}]
  %s8 = inlined_call_operand.vmem [shape: f32[1,6], index: 8, kind: input, shape index: {}]
  %s9 = inlined_call_operand.vmem [shape: f32[32,6], index: 9, kind: output, shape index: {}]
  %s10 = sld [smem:[#allocation0]]
  $region50: #{tpu_custom_call.1} parent=0
    _
  %s12 = ssub.s32 1, %s10
  %s13 = scalar_select 0, %s12, %s10
  $region1: #{tpu_custom_call.1} parent=0
    #allocation2 [shape = 'u8[131072]{0}', space=vmem, size = 0x20000, scoped, tag = 'input window, operand 3, single buffered']
    #allocation3 [shape = 's32[1]{0}', space=sflag, size = 0x4, scoped, tag = 'scoped memory for tpu_custom_call.1']
    %14 = vsyncpa [#allocation3], 0
    // Predicated region
    $region2: #{tpu_custom_call.1} parent=1 // pred_check
      _
    $region3: #{tpu_custom_call.1} parent=1 // pred_check_branch
      %16 = sbr.rel (0) target = $region5
    $region4: #{tpu_custom_call.1} parent=1 // pred_region
      _
    $region5: #{tpu_custom_call.1} parent=1 // pred_fallthru
      _
    // Predicated region
    $region6: #{tpu_custom_call.1} parent=1 // pred_check
      _
    $region7: #{tpu_custom_call.1} parent=1 // pred_check_branch
      %18 = sbr.rel (0) target = $region9
    $region8: #{tpu_custom_call.1} parent=1 // pred_region
      _
    $region9: #{tpu_custom_call.1} parent=1 // pred_fallthru
      _
    // Predicated region
    $region10: #{tpu_custom_call.1} parent=1 // pred_check
      _
    $region11: #{tpu_custom_call.1} parent=1 // pred_check_branch
      %20 = sbr.rel (0) target = $region13
    $region12: #{tpu_custom_call.1} parent=1 // pred_region
      _
    $region13: #{tpu_custom_call.1} parent=1 // pred_fallthru
      _
    // Predicated region
    $region14: #{tpu_custom_call.1} parent=1 // pred_check
      _
    $region15: #{tpu_custom_call.1} parent=1 // pred_check_branch
      %22 = sbr.rel (0) target = $region17
    $region16: #{tpu_custom_call.1} parent=1 // pred_region
      %s24 = ssub.s32 4096, 4096
      %25 = vsyncadd [#allocation3], %s24
      %s26 = sshll.u32 [#allocation2], 4
      %s27 = int_to_ptr.vmem [resolvable:$true] %s26
      %32 = dma.hbm_to_vmem [thread:$0]  %s3, 4096, %s27, [#allocation3], 128, 128, 8
    $region17: #{tpu_custom_call.1} parent=1 // pred_fallthru
      _
    // Predicated region
    $region18: #{tpu_custom_call.1} parent=1 // pred_check
      _
    $region19: #{tpu_custom_call.1} parent=1 // pred_check_branch
      %34 = sbr.rel (0) target = $region21
    $region20: #{tpu_custom_call.1} parent=1 // pred_region
      _
    $region21: #{tpu_custom_call.1} parent=1 // pred_fallthru
      _
    // Predicated region
    $region22: #{tpu_custom_call.1} parent=1 // pred_check
      _
    $region23: #{tpu_custom_call.1} parent=1 // pred_check_branch
      %36 = sbr.rel (0) target = $region25
    $region24: #{tpu_custom_call.1} parent=1 // pred_region
      _
    $region25: #{tpu_custom_call.1} parent=1 // pred_fallthru
      _
    // Predicated region
    $region26: #{tpu_custom_call.1} parent=1 // pred_check
      _
    $region27: #{tpu_custom_call.1} parent=1 // pred_check_branch
      %38 = sbr.rel (0) target = $region29
    $region28: #{tpu_custom_call.1} parent=1 // pred_region
      _
    $region29: #{tpu_custom_call.1} parent=1 // pred_fallthru
      _
    // Predicated region
    $region30: #{tpu_custom_call.1} parent=1 // pred_check
      _
    $region31: #{tpu_custom_call.1} parent=1 // pred_check_branch
      %40 = sbr.rel (0) target = $region33
    $region32: #{tpu_custom_call.1} parent=1 // pred_region
      _
    $region33: #{tpu_custom_call.1} parent=1 // pred_fallthru
      _
    // Predicated region
    $region34: #{tpu_custom_call.1} parent=1 // pred_check
      _
    $region35: #{tpu_custom_call.1} parent=1 // pred_check_branch
      %42 = sbr.rel (0) target = $region37
    $region36: #{tpu_custom_call.1} parent=1 // pred_region
      _
    $region37: #{tpu_custom_call.1} parent=1 // pred_fallthru
      _
    // Predicated region
    $region38: #{tpu_custom_call.1} parent=1 // pred_check
      _
    $region39: #{tpu_custom_call.1} parent=1 // pred_check_branch
      %44 = sbr.rel (0) target = $region41
    $region40: #{tpu_custom_call.1} parent=1 // pred_region
      %45 = dma.done [#allocation3], 4096
    $region41: #{tpu_custom_call.1} parent=1 // pred_fallthru
      _
    %v46 = vld [vmem:[%s0] sm:$0xff]
    %v47 = vld [vmem:[%s0 + $0x8] sm:$0xff]
    %v48 = vld [vmem:[%s0 + $0x10] sm:$0xff]
    %v49 = vld [vmem:[%s0 + $0x18] sm:$0xff]
    %v50 = vld [vmem:[%s1] sm:$0xff]
    %v51 = vld [vmem:[%s1 + $0x8] sm:$0xff]
    %v52 = vld [vmem:[%s1 + $0x10] sm:$0xff]
    %v53 = vld [vmem:[%s1 + $0x18] sm:$0xff]
    %v54 = vld [vmem:[%s1 + $0x20] sm:$0xff]
    %v55 = vld [vmem:[%s1 + $0x28] sm:$0xff]
    %v56 = vld [vmem:[%s2] sm:$0x3]
    %v58 = vlaneseq
    %v59 = vshrl.u32 %v58, 7
    %v60 = vsub.s32 0, %v59
    %v61 = vrot.slane %v56, %v60
    %v62 = vlaneseq
    %v63 = vshrl.u32 %v62, 7
    %v64 = vsub.s32 1, %v63
    %v65 = vrot.slane %v56, %v64
    %vm68 = vcmask 195584
    %v70 = vsel %vm68, %v46, 0
    %v73 = vsel %vm68, %v47, 0
    %v76 = vsel %vm68, %v48, 0
    %v79 = vsel %vm68, %v49, 0
    %81 = vmatprep.subr.mxu0 %v51
    %82 = vmatpush1.msra.mxu0 %v50
    %83 = vmatprep.subr.mxu0 %v53
    %84 = vmatpush1.msra.mxu0 %v52
    %85 = vmatprep.subr.mxu0 %v55
    %86 = vmatpush1.msra.mxu0 %v54
    %87 = vmatprep.subr.mxu0 0.0
    %88 = vmatpush1.msra.mxu0 0.0
    %89 = vmatprep.subr.mxu0 0.0
    %90 = vmatpush1.msra.mxu0 0.0
    %91 = vmatprep.subr.mxu0 0.0
    %92 = vmatpush1.msra.mxu0 0.0
    %93 = vmatprep.subr.mxu0 0.0
    %94 = vmatpush1.msra.mxu0 0.0
    %95 = vmatprep.subr.mxu0 0.0
    %96 = vmatpush1.msra.mxu0 0.0
    %97 = vmatprep.subr.mxu0 0.0
    %98 = vmatpush1.msra.mxu0 0.0
    %99 = vmatprep.subr.mxu0 0.0
    %100 = vmatpush1.msra.mxu0 0.0
    %101 = vmatprep.subr.mxu0 0.0
    %102 = vmatpush1.msra.mxu0 0.0
    %103 = vmatprep.subr.mxu0 0.0
    %104 = vmatpush1.msra.mxu0 0.0
    %105 = vmatprep.subr.mxu0 0.0
    %106 = vmatpush1.msra.mxu0 0.0
    %107 = vmatprep.subr.mxu0 0.0
    %108 = vmatpush1.msra.mxu0 0.0
    %109 = vmatprep.subr.mxu0 0.0
    %110 = vmatpush1.msra.mxu0 0.0
    %111 = vmatprep.subr.mxu0 0.0
    %112 = vmatpush1.msra.mxu0 0.0
    %113 = vmatprep.subr.mxu0 0.0
    %114 = vmatpush1.msra.mxu0 0.0
    %115 = vmatprep.subr.mxu0 0.0
    %116 = vmatpush1.msra.mxu0 0.0
    %117 = vmatprep.subr.mxu0 0.0
    %118 = vmatpush1.msra.mxu0 0.0
    %119 = vmatprep.subr.mxu0 0.0
    %120 = vmatpush1.msra.mxu0 0.0
    %121 = vmatprep.subr.mxu0 0.0
    %122 = vmatpush1.msra.mxu0 0.0
    %123 = vmatprep.subr.mxu0 0.0
    %124 = vmatpush1.msra.mxu0 0.0
    %125 = vmatprep.subr.mxu0 0.0
    %126 = vmatpush1.msra.mxu0 0.0
    %127 = vmatprep.subr.mxu0 0.0
    %128 = vmatpush1.msra.mxu0 0.0
    %129 = vmatprep.subr.mxu0 0.0
    %130 = vmatpush1.msra.mxu0 0.0
    %131 = vmatprep.subr.mxu0 0.0
    %132 = vmatpush1.msra.mxu0 0.0
    %133 = vmatprep.subr.mxu0 0.0
    %134 = vmatpush1.msra.mxu0 0.0
    %135 = vmatprep.subr.mxu0 0.0
    %136 = vmatpush1.msra.mxu0 0.0
    %137 = vmatprep.subr.mxu0 0.0
    %138 = vmatpush1.msra.mxu0 0.0
    %139 = vmatprep.subr.mxu0 0.0
    %140 = vmatpush1.msra.mxu0 0.0
    %141 = vmatprep.subr.mxu0 0.0
    %142 = vmatpush1.msra.mxu0 0.0
    %143 = vmatprep.subr.mxu0 0.0
    %144 = vmatpush1.msra.mxu0 0.0
    %145 = vmatprep.mubr.f32.mxu0 0.0
    %146 = vmatmul.mubr.f32.gmra.mrb[0].mxu0 %v70
    %v147 = vpop.f32.mrb[0].mxu0
    %v148 = vadd.f32 %v61, %v147
    %v149 = vpop.f32.mrb[0].mxu0
    %v150 = vadd.f32 %v65, %v149
    %151 = vmatprep.mubr.f32.mxu0 0.0
    %152 = vmatmul.mubr.f32.gmra.mrb[0].mxu0 %v73
    %v153 = vpop.f32.mrb[0].mxu0
    %v154 = vadd.f32 %v61, %v153
    %v155 = vpop.f32.mrb[0].mxu0
    %v156 = vadd.f32 %v65, %v155
    %157 = vmatprep.mubr.f32.mxu0 0.0
    %158 = vmatmul.mubr.f32.gmra.mrb[0].mxu0 %v76
    %v159 = vpop.f32.mrb[0].mxu0
    %v160 = vadd.f32 %v61, %v159
    %v161 = vpop.f32.mrb[0].mxu0
    %v162 = vadd.f32 %v65, %v161
    %163 = vmatprep.mubr.f32.mxu0 0.0
    %164 = vmatmul.mubr.f32.gmra.mrb[0].mxu0 %v79
    %v165 = vpop.f32.mrb[0].mxu0
    %v166 = vadd.f32 %v61, %v165
    %v167 = vpop.f32.mrb[0].mxu0
    %v168 = vadd.f32 %v65, %v167
    %169 = vdwg.mxu0
    %v170 = vmax.f32 %v148, 0.0
    %v171 = vmax.f32 %v150, 0.0
    %v172 = vmax.f32 %v154, 0.0
    %v173 = vmax.f32 %v156, 0.0
    %v174 = vmax.f32 %v160, 0.0
    %v175 = vmax.f32 %v162, 0.0
    %v176 = vmax.f32 %v166, 0.0
    %v177 = vmax.f32 %v168, 0.0
    %v178 = vld [vmem:[#allocation2] sm:$0xff]
    %v179 = vld [vmem:[#allocation2 + $0x8] sm:$0xff]
    %v180 = vld [vmem:[#allocation2 + $0x10] sm:$0xff]
    %v181 = vld [vmem:[#allocation2 + $0x18] sm:$0xff]
    %v182 = vld [vmem:[#allocation2 + $0x20] sm:$0xff]
    %v183 = vld [vmem:[#allocation2 + $0x28] sm:$0xff]
    %v184 = vld [vmem:[#allocation2 + $0x30] sm:$0xff]
    %v185 = vld [vmem:[#allocation2 + $0x38] sm:$0xff]
    %v186 = vld [vmem:[#allocation2 + $0x40] sm:$0xff]
    %v187 = vld [vmem:[#allocation2 + $0x48] sm:$0xff]
    %v188 = vld [vmem:[#allocation2 + $0x50] sm:$0xff]
    %v189 = vld [vmem:[#allocation2 + $0x58] sm:$0xff]
    %v190 = vld [vmem:[#allocation2 + $0x60] sm:$0xff]
    %v191 = vld [vmem:[#allocation2 + $0x68] sm:$0xff]
    %v192 = vld [vmem:[#allocation2 + $0x70] sm:$0xff]
    %v193 = vld [vmem:[#allocation2 + $0x78] sm:$0xff]
    %v194 = vld [vmem:[#allocation2 + $0x80] sm:$0xff]
    %v195 = vld [vmem:[#allocation2 + $0x88] sm:$0xff]
    %v196 = vld [vmem:[#allocation2 + $0x90] sm:$0xff]
    %v197 = vld [vmem:[#allocation2 + $0x98] sm:$0xff]
    %v198 = vld [vmem:[#allocation2 + $0xa0] sm:$0xff]
    %v199 = vld [vmem:[#allocation2 + $0xa8] sm:$0xff]
    %v200 = vld [vmem:[#allocation2 + $0xb0] sm:$0xff]
    %v201 = vld [vmem:[#allocation2 + $0xb8] sm:$0xff]
    %v202 = vld [vmem:[#allocation2 + $0xc0] sm:$0xff]
    %v203 = vld [vmem:[#allocation2 + $0xc8] sm:$0xff]
    %v204 = vld [vmem:[#allocation2 + $0xd0] sm:$0xff]
    %v205 = vld [vmem:[#allocation2 + $0xd8] sm:$0xff]
    %v206 = vld [vmem:[#allocation2 + $0xe0] sm:$0xff]
    %v207 = vld [vmem:[#allocation2 + $0xe8] sm:$0xff]
    %v208 = vld [vmem:[#allocation2 + $0xf0] sm:$0xff]
    %v209 = vld [vmem:[#allocation2 + $0xf8] sm:$0xff]
    %v210 = vld [vmem:[%s4] sm:$0x1]
    %v212 = vlaneseq
    %v213 = vshrl.u32 %v212, 7
    %v214 = vsub.s32 0, %v213
    %v215 = vrot.slane %v210, %v214
    %217 = vmatprep.subr.mxu0 0.0
    %218 = vmatpush1.msra.mxu0 %v178
    %219 = vmatprep.subr.mxu0 0.0
    %220 = vmatpush1.msra.mxu0 %v179
    %221 = vmatprep.subr.mxu0 0.0
    %222 = vmatpush1.msra.mxu0 %v180
    %223 = vmatprep.subr.mxu0 0.0
    %224 = vmatpush1.msra.mxu0 %v181
    %225 = vmatprep.subr.mxu0 0.0
    %226 = vmatpush1.msra.mxu0 %v182
    %227 = vmatprep.subr.mxu0 0.0
    %228 = vmatpush1.msra.mxu0 %v183
    %229 = vmatprep.subr.mxu0 0.0
    %230 = vmatpush1.msra.mxu0 %v184
    %231 = vmatprep.subr.mxu0 0.0
    %232 = vmatpush1.msra.mxu0 %v185
    %233 = vmatprep.subr.mxu0 0.0
    %234 = vmatpush1.msra.mxu0 %v186
    %235 = vmatprep.subr.mxu0 0.0
    %236 = vmatpush1.msra.mxu0 %v187
    %237 = vmatprep.subr.mxu0 0.0
    %238 = vmatpush1.msra.mxu0 %v188
    %239 = vmatprep.subr.mxu0 0.0
    %240 = vmatpush1.msra.mxu0 %v189
    %241 = vmatprep.subr.mxu0 0.0
    %242 = vmatpush1.msra.mxu0 %v190
    %243 = vmatprep.subr.mxu0 0.0
    %244 = vmatpush1.msra.mxu0 %v191
    %245 = vmatprep.subr.mxu0 0.0
    %246 = vmatpush1.msra.mxu0 %v192
    %247 = vmatprep.subr.mxu0 0.0
    %248 = vmatpush1.msra.mxu0 %v193
    %249 = vmatprep.subr.mxu0 0.0
    %250 = vmatpush1.msra.mxu0 %v194
    %251 = vmatprep.subr.mxu0 0.0
    %252 = vmatpush1.msra.mxu0 %v195
    %253 = vmatprep.subr.mxu0 0.0
    %254 = vmatpush1.msra.mxu0 %v196
    %255 = vmatprep.subr.mxu0 0.0
    %256 = vmatpush1.msra.mxu0 %v197
    %257 = vmatprep.subr.mxu0 0.0
    %258 = vmatpush1.msra.mxu0 %v198
    %259 = vmatprep.subr.mxu0 0.0
    %260 = vmatpush1.msra.mxu0 %v199
    %261 = vmatprep.subr.mxu0 0.0
    %262 = vmatpush1.msra.mxu0 %v200
    %263 = vmatprep.subr.mxu0 0.0
    %264 = vmatpush1.msra.mxu0 %v201
    %265 = vmatprep.subr.mxu0 0.0
    %266 = vmatpush1.msra.mxu0 %v202
    %267 = vmatprep.subr.mxu0 0.0
    %268 = vmatpush1.msra.mxu0 %v203
    %269 = vmatprep.subr.mxu0 0.0
    %270 = vmatpush1.msra.mxu0 %v204
    %271 = vmatprep.subr.mxu0 0.0
    %272 = vmatpush1.msra.mxu0 %v205
    %273 = vmatprep.subr.mxu0 0.0
    %274 = vmatpush1.msra.mxu0 %v206
    %275 = vmatprep.subr.mxu0 0.0
    %276 = vmatpush1.msra.mxu0 %v207
    %277 = vmatprep.subr.mxu0 0.0
    %278 = vmatpush1.msra.mxu0 %v208
    %279 = vmatprep.subr.mxu0 0.0
    %280 = vmatpush1.msra.mxu0 %v209
    %281 = vmatprep.mubr.f32.mxu0 %v171
    %282 = vmatmul.mubr.f32.gmra.mrb[0].mxu0 %v170
    %v283 = vpop.f32.mrb[0].mxu0
    %v284 = vadd.f32 %v215, %v283
    %v285 = vpop.f32.mrb[0].mxu0
    %286 = vmatprep.mubr.f32.mxu0 %v173
    %287 = vmatmul.mubr.f32.gmra.mrb[0].mxu0 %v172
    %v288 = vpop.f32.mrb[0].mxu0
    %v289 = vadd.f32 %v215, %v288
    %v290 = vpop.f32.mrb[0].mxu0
    %291 = vmatprep.mubr.f32.mxu0 %v175
    %292 = vmatmul.mubr.f32.gmra.mrb[0].mxu0 %v174
    %v293 = vpop.f32.mrb[0].mxu0
    %v294 = vadd.f32 %v215, %v293
    %v295 = vpop.f32.mrb[0].mxu0
    %296 = vmatprep.mubr.f32.mxu0 %v177
    %297 = vmatmul.mubr.f32.gmra.mrb[0].mxu0 %v176
    %v298 = vpop.f32.mrb[0].mxu0
    %v299 = vadd.f32 %v215, %v298
    %v300 = vpop.f32.mrb[0].mxu0
    %301 = vdwg.mxu0
    %v302 = vmax.f32 %v284, 0.0
    %v303 = vmax.f32 %v289, 0.0
    %v304 = vmax.f32 %v294, 0.0
    %v305 = vmax.f32 %v299, 0.0
    %v306 = vld [vmem:[%s5] sm:$0xff]
    %v307 = vld [vmem:[%s5 + $0x8] sm:$0xff]
    %v308 = vld [vmem:[%s5 + $0x10] sm:$0xff]
    %v309 = vld [vmem:[%s5 + $0x18] sm:$0xff]
    %v310 = vld [vmem:[%s5 + $0x20] sm:$0xff]
    %v311 = vld [vmem:[%s5 + $0x28] sm:$0xff]
    %v312 = vld [vmem:[%s5 + $0x30] sm:$0xff]
    %v313 = vld [vmem:[%s5 + $0x38] sm:$0xff]
    %v314 = vld [vmem:[%s5 + $0x40] sm:$0xff]
    %v315 = vld [vmem:[%s5 + $0x48] sm:$0xff]
    %v316 = vld [vmem:[%s5 + $0x50] sm:$0xff]
    %v317 = vld [vmem:[%s5 + $0x58] sm:$0xff]
    %v318 = vld [vmem:[%s5 + $0x60] sm:$0xff]
    %v319 = vld [vmem:[%s5 + $0x68] sm:$0xff]
    %v320 = vld [vmem:[%s5 + $0x70] sm:$0xff]
    %v321 = vld [vmem:[%s5 + $0x78] sm:$0xff]
    %v322 = vld [vmem:[%s6] sm:$0x1]
    %v324 = vlaneseq
    %v325 = vshrl.u32 %v324, 7
    %v326 = vsub.s32 0, %v325
    %v327 = vrot.slane %v322, %v326
    %329 = vmatprep.subr.mxu0 0.0
    %330 = vmatpush1.msra.mxu0 %v306
    %331 = vmatprep.subr.mxu0 0.0
    %332 = vmatpush1.msra.mxu0 %v307
    %333 = vmatprep.subr.mxu0 0.0
    %334 = vmatpush1.msra.mxu0 %v308
    %335 = vmatprep.subr.mxu0 0.0
    %336 = vmatpush1.msra.mxu0 %v309
    %337 = vmatprep.subr.mxu0 0.0
    %338 = vmatpush1.msra.mxu0 %v310
    %339 = vmatprep.subr.mxu0 0.0
    %340 = vmatpush1.msra.mxu0 %v311
    %341 = vmatprep.subr.mxu0 0.0
    %342 = vmatpush1.msra.mxu0 %v312
    %343 = vmatprep.subr.mxu0 0.0
    %344 = vmatpush1.msra.mxu0 %v313
    %345 = vmatprep.subr.mxu0 0.0
    %346 = vmatpush1.msra.mxu0 %v314
    %347 = vmatprep.subr.mxu0 0.0
    %348 = vmatpush1.msra.mxu0 %v315
    %349 = vmatprep.subr.mxu0 0.0
    %350 = vmatpush1.msra.mxu0 %v316
    %351 = vmatprep.subr.mxu0 0.0
    %352 = vmatpush1.msra.mxu0 %v317
    %353 = vmatprep.subr.mxu0 0.0
    %354 = vmatpush1.msra.mxu0 %v318
    %355 = vmatprep.subr.mxu0 0.0
    %356 = vmatpush1.msra.mxu0 %v319
    %357 = vmatprep.subr.mxu0 0.0
    %358 = vmatpush1.msra.mxu0 %v320
    %359 = vmatprep.subr.mxu0 0.0
    %360 = vmatpush1.msra.mxu0 %v321
    %361 = vmatprep.subr.mxu0 0.0
    %362 = vmatpush1.msra.mxu0 0.0
    %363 = vmatprep.subr.mxu0 0.0
    %364 = vmatpush1.msra.mxu0 0.0
    %365 = vmatprep.subr.mxu0 0.0
    %366 = vmatpush1.msra.mxu0 0.0
    %367 = vmatprep.subr.mxu0 0.0
    %368 = vmatpush1.msra.mxu0 0.0
    %369 = vmatprep.subr.mxu0 0.0
    %370 = vmatpush1.msra.mxu0 0.0
    %371 = vmatprep.subr.mxu0 0.0
    %372 = vmatpush1.msra.mxu0 0.0
    %373 = vmatprep.subr.mxu0 0.0
    %374 = vmatpush1.msra.mxu0 0.0
    %375 = vmatprep.subr.mxu0 0.0
    %376 = vmatpush1.msra.mxu0 0.0
    %377 = vmatprep.subr.mxu0 0.0
    %378 = vmatpush1.msra.mxu0 0.0
    %379 = vmatprep.subr.mxu0 0.0
    %380 = vmatpush1.msra.mxu0 0.0
    %381 = vmatprep.subr.mxu0 0.0
    %382 = vmatpush1.msra.mxu0 0.0
    %383 = vmatprep.subr.mxu0 0.0
    %384 = vmatpush1.msra.mxu0 0.0
    %385 = vmatprep.subr.mxu0 0.0
    %386 = vmatpush1.msra.mxu0 0.0
    %387 = vmatprep.subr.mxu0 0.0
    %388 = vmatpush1.msra.mxu0 0.0
    %389 = vmatprep.subr.mxu0 0.0
    %390 = vmatpush1.msra.mxu0 0.0
    %391 = vmatprep.subr.mxu0 0.0
    %392 = vmatpush1.msra.mxu0 0.0
    %393 = vmatprep.mubr.f32.mxu0 0.0
    %394 = vmatmul.mubr.f32.gmra.mrb[0].mxu0 %v302
    %v395 = vpop.f32.mrb[0].mxu0
    %v396 = vadd.f32 %v327, %v395
    %v397 = vpop.f32.mrb[0].mxu0
    %398 = vmatprep.mubr.f32.mxu0 0.0
    %399 = vmatmul.mubr.f32.gmra.mrb[0].mxu0 %v303
    %v400 = vpop.f32.mrb[0].mxu0
    %v401 = vadd.f32 %v327, %v400
    %v402 = vpop.f32.mrb[0].mxu0
    %403 = vmatprep.mubr.f32.mxu0 0.0
    %404 = vmatmul.mubr.f32.gmra.mrb[0].mxu0 %v304
    %v405 = vpop.f32.mrb[0].mxu0
    %v406 = vadd.f32 %v327, %v405
    %v407 = vpop.f32.mrb[0].mxu0
    %408 = vmatprep.mubr.f32.mxu0 0.0
    %409 = vmatmul.mubr.f32.gmra.mrb[0].mxu0 %v305
    %v410 = vpop.f32.mrb[0].mxu0
    %v411 = vadd.f32 %v327, %v410
    %v412 = vpop.f32.mrb[0].mxu0
    %413 = vdwg.mxu0
    %v414 = vmax.f32 %v396, 0.0
    %v415 = vmax.f32 %v401, 0.0
    %v416 = vmax.f32 %v406, 0.0
    %v417 = vmax.f32 %v411, 0.0
    %v418 = vld [vmem:[%s7] sm:$0xff]
    %v419 = vld [vmem:[%s7 + $0x8] sm:$0xff]
    %v420 = vld [vmem:[%s7 + $0x10] sm:$0xff]
    %v421 = vld [vmem:[%s7 + $0x18] sm:$0xff]
    %v422 = vld [vmem:[%s7 + $0x20] sm:$0xff]
    %v423 = vld [vmem:[%s7 + $0x28] sm:$0xff]
    %v424 = vld [vmem:[%s7 + $0x30] sm:$0xff]
    %v425 = vld [vmem:[%s7 + $0x38] sm:$0xff]
    %v426 = vld [vmem:[%s7 + $0x40] sm:$0xff]
    %v427 = vld [vmem:[%s7 + $0x48] sm:$0xff]
    %v428 = vld [vmem:[%s7 + $0x50] sm:$0xff]
    %v429 = vld [vmem:[%s7 + $0x58] sm:$0xff]
    %v430 = vld [vmem:[%s7 + $0x60] sm:$0xff]
    %v431 = vld [vmem:[%s7 + $0x68] sm:$0xff]
    %v432 = vld [vmem:[%s7 + $0x70] sm:$0xff]
    %v433 = vld [vmem:[%s7 + $0x78] sm:$0xff]
    %v434 = vld [vmem:[%s8] sm:$0x1]
    %v436 = vlaneseq
    %v437 = vshrl.u32 %v436, 7
    %v438 = vsub.s32 0, %v437
    %v439 = vrot.slane %v434, %v438
    %441 = vmatprep.subr.mxu0 0.0
    %442 = vmatpush1.msra.mxu0 %v418
    %443 = vmatprep.subr.mxu0 0.0
    %444 = vmatpush1.msra.mxu0 %v419
    %445 = vmatprep.subr.mxu0 0.0
    %446 = vmatpush1.msra.mxu0 %v420
    %447 = vmatprep.subr.mxu0 0.0
    %448 = vmatpush1.msra.mxu0 %v421
    %449 = vmatprep.subr.mxu0 0.0
    %450 = vmatpush1.msra.mxu0 %v422
    %451 = vmatprep.subr.mxu0 0.0
    %452 = vmatpush1.msra.mxu0 %v423
    %453 = vmatprep.subr.mxu0 0.0
    %454 = vmatpush1.msra.mxu0 %v424
    %455 = vmatprep.subr.mxu0 0.0
    %456 = vmatpush1.msra.mxu0 %v425
    %457 = vmatprep.subr.mxu0 0.0
    %458 = vmatpush1.msra.mxu0 %v426
    %459 = vmatprep.subr.mxu0 0.0
    %460 = vmatpush1.msra.mxu0 %v427
    %461 = vmatprep.subr.mxu0 0.0
    %462 = vmatpush1.msra.mxu0 %v428
    %463 = vmatprep.subr.mxu0 0.0
    %464 = vmatpush1.msra.mxu0 %v429
    %465 = vmatprep.subr.mxu0 0.0
    %466 = vmatpush1.msra.mxu0 %v430
    %467 = vmatprep.subr.mxu0 0.0
    %468 = vmatpush1.msra.mxu0 %v431
    %469 = vmatprep.subr.mxu0 0.0
    %470 = vmatpush1.msra.mxu0 %v432
    %471 = vmatprep.subr.mxu0 0.0
    %472 = vmatpush1.msra.mxu0 %v433
    %473 = vmatprep.subr.mxu0 0.0
    %474 = vmatpush1.msra.mxu0 0.0
    %475 = vmatprep.subr.mxu0 0.0
    %476 = vmatpush1.msra.mxu0 0.0
    %477 = vmatprep.subr.mxu0 0.0
    %478 = vmatpush1.msra.mxu0 0.0
    %479 = vmatprep.subr.mxu0 0.0
    %480 = vmatpush1.msra.mxu0 0.0
    %481 = vmatprep.subr.mxu0 0.0
    %482 = vmatpush1.msra.mxu0 0.0
    %483 = vmatprep.subr.mxu0 0.0
    %484 = vmatpush1.msra.mxu0 0.0
    %485 = vmatprep.subr.mxu0 0.0
    %486 = vmatpush1.msra.mxu0 0.0
    %487 = vmatprep.subr.mxu0 0.0
    %488 = vmatpush1.msra.mxu0 0.0
    %489 = vmatprep.subr.mxu0 0.0
    %490 = vmatpush1.msra.mxu0 0.0
    %491 = vmatprep.subr.mxu0 0.0
    %492 = vmatpush1.msra.mxu0 0.0
    %493 = vmatprep.subr.mxu0 0.0
    %494 = vmatpush1.msra.mxu0 0.0
    %495 = vmatprep.subr.mxu0 0.0
    %496 = vmatpush1.msra.mxu0 0.0
    %497 = vmatprep.subr.mxu0 0.0
    %498 = vmatpush1.msra.mxu0 0.0
    %499 = vmatprep.subr.mxu0 0.0
    %500 = vmatpush1.msra.mxu0 0.0
    %501 = vmatprep.subr.mxu0 0.0
    %502 = vmatpush1.msra.mxu0 0.0
    %503 = vmatprep.subr.mxu0 0.0
    %504 = vmatpush1.msra.mxu0 0.0
    %505 = vmatprep.mubr.f32.mxu0 0.0
    %506 = vmatmul.mubr.f32.gmra.mrb[0].mxu0 %v414
    %v507 = vpop.f32.mrb[0].mxu0
    %v508 = vadd.f32 %v439, %v507
    %v509 = vpop.f32.mrb[0].mxu0
    %510 = vmatprep.mubr.f32.mxu0 0.0
    %511 = vmatmul.mubr.f32.gmra.mrb[0].mxu0 %v415
    %v512 = vpop.f32.mrb[0].mxu0
    %v513 = vadd.f32 %v439, %v512
    %v514 = vpop.f32.mrb[0].mxu0
    %515 = vmatprep.mubr.f32.mxu0 0.0
    %516 = vmatmul.mubr.f32.gmra.mrb[0].mxu0 %v416
    %v517 = vpop.f32.mrb[0].mxu0
    %v518 = vadd.f32 %v439, %v517
    %v519 = vpop.f32.mrb[0].mxu0
    %520 = vmatprep.mubr.f32.mxu0 0.0
    %521 = vmatmul.mubr.f32.gmra.mrb[0].mxu0 %v417
    %v522 = vpop.f32.mrb[0].mxu0
    %v523 = vadd.f32 %v439, %v522
    %v524 = vpop.f32.mrb[0].mxu0
    %525 = vdwg.mxu0
    %v526 = vtanh.pop %v508
    %v527 = vtanh.pop %v513
    %v528 = vtanh.pop %v518
    %v529 = vtanh.pop %v523
    %vm530 = vcmask 48128
    %531 = vst.msk [vmem:[%s9] sm:$0xff] %vm530, %v526
    %532 = vst.msk [vmem:[%s9 + $0x8] sm:$0xff] %vm530, %v527
    %533 = vst.msk [vmem:[%s9 + $0x10] sm:$0xff] %vm530, %v528
    %534 = vst.msk [vmem:[%s9 + $0x18] sm:$0xff] %vm530, %v529
    // Predicated region
    $region42: #{tpu_custom_call.1} parent=1 // pred_check
      _
    $region43: #{tpu_custom_call.1} parent=1 // pred_check_branch
      %536 = sbr.rel (0) target = $region45
    $region44: #{tpu_custom_call.1} parent=1 // pred_region
      _
    $region45: #{tpu_custom_call.1} parent=1 // pred_fallthru
      _
    // Predicated region
    $region46: #{tpu_custom_call.1} parent=1 // pred_check
      _
    $region47: #{tpu_custom_call.1} parent=1 // pred_check_branch
      %538 = sbr.rel (0) target = $region49
    $region48: #{tpu_custom_call.1} parent=1 // pred_region
      _
    $region49: #{tpu_custom_call.1} parent=1 // pred_fallthru
      _
    %539 = vsyncpa [#allocation3], 1

</llo_original>
